<compile_context>
chip_gen: v7x
topology: tpu7x:2x2x1
jax: 0.10.0
libtpu: 0.0.40
codegen_flags: <defaults>
</compile_context>

<pallas_src>
import functools

import jax
import jax.numpy as jnp
from jax.experimental import pallas as pl
from jax.experimental.pallas import tpu as pltpu


def _round_up(x, m):
    return ((x + m - 1) // m) * m


def _vmem_capacity_bytes():
    try:
        info = pltpu.get_tpu_info()
        cap = int(getattr(info, "vmem_capacity_bytes", 0))
        if cap > 0:
            return cap
    except Exception:
        pass
    return 64 * 1024 * 1024          # conservative fallback (v7x-sized)


def _choose_tile_batch(batch, action_dim, itemsize, vmem_cap):
    # Byte budget per policy tile (per input, before the x2 pipeline
    # double-buffering): 4 MiB on 128-MiB-VMEM parts (v5e/v6e), 2 MiB on
    # 64-MiB parts (v7x).  2 inputs x 2 buffers -> 8-16 MiB of policy VMEM.
    target = (4 if vmem_cap >= 96 * 1024 * 1024 else 2) * 1024 * 1024
    rows = target // max(1, action_dim * itemsize)
    rows = max(8, min(rows, _round_up(batch, 8)))
    return (rows // 8) * 8


def _alpha_loss_kernel(y_value_ref, value_ref, y_policy_ref, policy_ref,
                       out_ref, acc_ref, *, true_batch, tile_batch,
                       tiles_per_split):
    c = pl.program_id(0)          # "parallel" split (both TCs on v7x)
    i = pl.program_id(1)          # "arbitrary" reduction over batch tiles
    n_i = pl.num_programs(1)

    @pl.when(i == 0)
    def _init():
        acc_ref[...] = jnp.zeros_like(acc_ref)

    # Row-validity mask for this tile: handles the ragged last tile and the
    # clamped duplicate tile of an uneven split. Applied BEFORE the log/mul so
    # unspecified out-of-bounds data (even NaN) contributes exactly 0.
    tile_idx = c * tiles_per_split + i
    rows_left = true_batch - tile_idx * tile_batch
    row_ids = jax.lax.broadcasted_iota(jnp.int32, (tile_batch, 1), 0)
    valid = row_ids < rows_left                                      # (TB, 1)

    y_p = jnp.where(valid, y_policy_ref[...].astype(jnp.float32),
                    jnp.float32(1.0))
    p = jnp.where(valid, policy_ref[...].astype(jnp.float32),
                  jnp.float32(0.0))
    # Negation folded out of the hot loop (applied once in the finalize).
    prod = p * jnp.log(jnp.float32(1e-8) + y_p)                      # (TB, A)

    # Elementwise (8, A) accumulation: VPU adds only in the streaming loop.
    acc_ref[...] += jnp.sum(
        prod.reshape(tile_batch // 8, 8, prod.shape[-1]), axis=0)

    @pl.when(i == n_i - 1)
    def _finalize():
        policy_sum = jnp.sum(acc_ref[...], axis=(0, 1), keepdims=True)  # (1,1)
        # Lane-dense value head (1, B). Only split 0 contributes it so it is
        # counted exactly once when the wrapper sums the per-split partials.
        dv = (value_ref[...].astype(jnp.float32)
              - y_value_ref[...].astype(jnp.float32))
        vsum = jnp.sum(dv * dv, axis=(0, 1), keepdims=True)             # (1,1)
        total = -policy_sum + jnp.where(c == 0, vsum, jnp.zeros_like(vsum))
        out_ref[...] = total.reshape(1, 1, 1)


def alpha_loss(y_value, value, y_policy, policy, *, tile_batch=None,
               force_pallas=False):
    """y_value/value: (B,) or (B,1); y_policy/policy: (B, A). Returns f32 scalar."""
    y_policy = jnp.asarray(y_policy)
    policy = jnp.asarray(policy)
    B, A = y_policy.shape

    # Tiny inputs: XLA-fused jnp beats Pallas call + DMA setup overhead.
    if (not force_pallas
            and y_policy.size * jnp.dtype(y_policy.dtype).itemsize < (1 << 16)):
        return alpha_loss_ref(y_value, value, y_policy, policy)

    # Lane-dense layout for the value head (batch on the 128-lane axis);
    # full-array block (exempt from the (8,128) rule), resident across grid.
    y_value2 = jnp.asarray(y_value).reshape(1, B)
    value2 = jnp.asarray(value).reshape(1, B)

    vmem_cap = _vmem_capacity_bytes()
    pol_itemsize = max(jnp.dtype(y_policy.dtype).itemsize,
                       jnp.dtype(policy.dtype).itemsize)
    if tile_batch is None:
        tile_batch = _choose_tile_batch(B, A, pol_itemsize, vmem_cap)
    tile_batch = max(8, (int(tile_batch) // 8) * 8)

    num_tiles = int(pl.cdiv(B, tile_batch))
    # Leading "parallel" axis: lets v7x shard the reduction across its two
    # TensorCores (harmless on single-TC v5e/v6e).
    num_splits = 2 if num_tiles >= 2 else 1
    tiles_per_split = int(pl.cdiv(num_tiles, num_splits))

    def policy_index_map(c, i):
        # Clamp so the possible extra step of an uneven split re-reads a valid
        # tile; its contribution is masked to zero inside the kernel.
        return (jnp.minimum(c * tiles_per_split + i, num_tiles - 1), 0)

    kernel = functools.partial(
        _alpha_loss_kernel, true_batch=B, tile_batch=tile_batch,
        tiles_per_split=tiles_per_split)

    # Scoped-VMEM budget: policy tiles (2 inputs x 2 pipeline buffers) +
    # resident value arrays (x2 buffers) + scratch + slack, per generation.
    val_itemsize = jnp.dtype(value2.dtype).itemsize
    vmem_needed = (2 * 2 * tile_batch * A * pol_itemsize
                   + 2 * 2 * B * val_itemsize
                   + 8 * A * 4 + (2 << 20))
    base_limit = (64 if vmem_cap >= 96 * 1024 * 1024 else 32) * 1024 * 1024
    vmem_limit = int(min(max(base_limit, vmem_needed),
                         max(vmem_cap - (8 << 20), 16 << 20)))

    partials = pl.pallas_call(
        kernel,
        out_shape=jax.ShapeDtypeStruct((num_splits, 1, 1), jnp.float32),
        grid_spec=pltpu.PrefetchScalarGridSpec(
            num_scalar_prefetch=0,
            grid=(num_splits, tiles_per_split),
            in_specs=[
                # Tiny value arrays: whole-array blocks, resident across grid.
                # TODO(synk): tile / single-buffer the value head for huge B on v7x.
                pl.BlockSpec((1, B), lambda c, i: (0, 0)),
                pl.BlockSpec((1, B), lambda c, i: (0, 0)),
                # Policy tensors: batch-tiled, auto double-buffered by Pallas.
                pl.BlockSpec((tile_batch, A), policy_index_map),
                pl.BlockSpec((tile_batch, A), policy_index_map),
            ],
            out_specs=pl.BlockSpec((1, 1, 1), lambda c, i: (c, 0, 0)),
            scratch_shapes=[pltpu.VMEM((8, A), jnp.float32)],
        ),
        compiler_params=pltpu.CompilerParams(
            dimension_semantics=("parallel", "arbitrary"),
            vmem_limit_bytes=vmem_limit,
        ),
    )(y_value2, value2, y_policy, policy)

    return jnp.sum(partials) / jnp.float32(B)


def alpha_loss_ref(y_value, value, y_policy, policy):
    value_error = (jnp.asarray(value).reshape(-1).astype(jnp.float32)
                   - jnp.asarray(y_value).reshape(-1).astype(jnp.float32)) ** 2
    policy_error = jnp.sum(
        -policy.astype(jnp.float32) * jnp.log(1e-8 + y_policy.astype(jnp.float32)),
        axis=1)
    return jnp.mean(value_error + policy_error)


if __name__ == "__main__":
    key = jax.random.PRNGKey(0)
    k1, k2, k3, k4 = jax.random.split(key, 4)

    # Small shapes chosen so one run exercises: multi-step accumulation, the
    # two-way core split, the clamped duplicate grid step, and the masked
    # ragged last tile:  B=44, tile_batch=16 -> 3 real tiles, grid (2, 2).
    B, A = 44, 128

    y_value = jnp.tanh(jax.random.normal(k1, (B, 1), dtype=jnp.float32))
    value = jnp.tanh(jax.random.normal(k2, (B, 1), dtype=jnp.float32))
    y_policy = jax.nn.softmax(jax.random.normal(k3, (B, A), dtype=jnp.float32), axis=-1)
    policy = jax.nn.softmax(jax.random.normal(k4, (B, A), dtype=jnp.float32), axis=-1)

    out = alpha_loss(y_value, value, y_policy, policy,
                     tile_batch=16, force_pallas=True)
    out = jax.block_until_ready(out)

    ref = alpha_loss_ref(y_value, value, y_policy, policy)
    assert jnp.allclose(out, ref, rtol=1e-5, atol=1e-5), (out, ref)

    print("KERNEL_OK")
</pallas_src>

<mosaic_0001>
module attributes {stable_mosaic.version = 11 : i64} {
  func.func @_alpha_loss_kernel(%arg0: i32, %arg1: i32, %arg2: memref<1x44xf32, #tpu.memory_space<vmem>>, %arg3: memref<1x44xf32, #tpu.memory_space<vmem>>, %arg4: memref<16x128xf32, #tpu.memory_space<vmem>>, %arg5: memref<16x128xf32, #tpu.memory_space<vmem>>, %arg6: memref<1x1x1xf32, #tpu.memory_space<vmem>>, %arg7: memref<8x128xf32, #tpu.memory_space<vmem>>) attributes {dimension_semantics = [#tpu.dimension_semantics<parallel>, #tpu.dimension_semantics<arbitrary>], iteration_bounds = array<i64: 2, 2>, scalar_prefetch = 0 : i64, scratch_operands = 1 : i64, tpu.core_type = #tpu.core_type<tc>, window_params = [{pipeline_mode = #tpu.pipeline_mode<synchronous>, transform_indices = @transform_0, window_bounds = array<i64: 1, 44>}, {pipeline_mode = #tpu.pipeline_mode<synchronous>, transform_indices = @transform_1, window_bounds = array<i64: 1, 44>}, {transform_indices = @transform_2, window_bounds = array<i64: 16, 128>}, {transform_indices = @transform_3, window_bounds = array<i64: 16, 128>}, {transform_indices = @transform_4, window_bounds = array<i64: 1, 1, 1>}]} {
    %c0_i32 = arith.constant 0 : i32
    %0 = arith.cmpi eq, %arg1, %c0_i32 : i32
    %1 = arith.extui %0 : i1 to i32
    %c0_i32_0 = arith.constant 0 : i32
    %2 = arith.cmpi ne, %1, %c0_i32_0 : i32
    scf.if %2 {
      %cst_12 = arith.constant 0.000000e+00 : f32
      %32 = vector.broadcast %cst_12 : f32 to vector<8x128xf32>
      %c0_13 = arith.constant 0 : index
      %c0_14 = arith.constant 0 : index
      %33 = vector.load %arg7[%c0_13, %c0_14] : memref<8x128xf32, #tpu.memory_space<vmem>>, vector<8x128xf32>
      tpu.vector_store %arg7[%c0_13, %c0_14], %32 {strides = array<i32>} : memref<8x128xf32, #tpu.memory_space<vmem>>, vector<8x128xf32>,
    } else {
    }
    %c2_i32 = arith.constant 2 : i32
    %3 = arith.muli %arg0, %c2_i32 : i32
    %4 = arith.addi %3, %arg1 : i32
    %c16_i32 = arith.constant 16 : i32
    %5 = arith.muli %4, %c16_i32 : i32
    %c44_i32 = arith.constant 44 : i32
    %6 = arith.subi %c44_i32, %5 : i32
    %7 = tpu.iota {dimensions = array<i32: 0>} : vector<16x1xi32>
    %8 = vector.broadcast %6 : i32 to vector<16x1xi32>
    %9 = arith.cmpi slt, %7, %8 : vector<16x1xi32>
    %c0 = arith.constant 0 : index
    %c0_1 = arith.constant 0 : index
    %10 = vector.load %arg4[%c0, %c0_1] : memref<16x128xf32, #tpu.memory_space<vmem>>, vector<16x128xf32>
    %cst = arith.constant 1.000000e+00 : f32
    %11 = vector.shape_cast %9 : vector<16x1xi1> to vector<16x1xi1>
    %12 = vector.broadcast %11 : vector<16x1xi1> to vector<16x128xi1>
    %13 = vector.broadcast %cst : f32 to vector<16x128xf32>
    %14 = arith.select %12, %10, %13 : vector<16x128xi1>, vector<16x128xf32>
    %c0_2 = arith.constant 0 : index
    %c0_3 = arith.constant 0 : index
    %15 = vector.load %arg5[%c0_2, %c0_3] : memref<16x128xf32, #tpu.memory_space<vmem>>, vector<16x128xf32>
    %cst_4 = arith.constant 0.000000e+00 : f32
    %16 = vector.shape_cast %9 : vector<16x1xi1> to vector<16x1xi1>
    %17 = vector.broadcast %16 : vector<16x1xi1> to vector<16x128xi1>
    %18 = vector.broadcast %cst_4 : f32 to vector<16x128xf32>
    %19 = arith.select %17, %15, %18 : vector<16x128xi1>, vector<16x128xf32>
    %cst_5 = arith.constant 9.99999993E-9 : f32
    %20 = vector.broadcast %cst_5 : f32 to vector<16x128xf32>
    %21 = arith.addf %20, %14 : vector<16x128xf32>
    %22 = math.log %21 : vector<16x128xf32>
    %23 = arith.mulf %19, %22 : vector<16x128xf32>
    %c0_6 = arith.constant 0 : index
    %c0_7 = arith.constant 0 : index
    %24 = vector.load %arg7[%c0_6, %c0_7] : memref<8x128xf32, #tpu.memory_space<vmem>>, vector<8x128xf32>
    %25 = vector.shape_cast %23 : vector<16x128xf32> to vector<2x8x128xf32>
    %cst_8 = arith.constant dense<0.000000e+00> : vector<8x128xf32>
    %26 = vector.multi_reduction <add>, %25, %cst_8 [0] : vector<2x8x128xf32> to vector<8x128xf32>
    %27 = arith.addf %24, %26 : vector<8x128xf32>
    %c0_9 = arith.constant 0 : index
    %c0_10 = arith.constant 0 : index
    %28 = vector.load %arg7[%c0_9, %c0_10] : memref<8x128xf32, #tpu.memory_space<vmem>>, vector<8x128xf32>
    tpu.vector_store %arg7[%c0_9, %c0_10], %27 {strides = array<i32>} : memref<8x128xf32, #tpu.memory_space<vmem>>, vector<8x128xf32>,
    %c1_i32 = arith.constant 1 : i32
    %29 = arith.cmpi eq, %arg1, %c1_i32 : i32
    %30 = arith.extui %29 : i1 to i32
    %c0_i32_11 = arith.constant 0 : i32
    %31 = arith.cmpi ne, %30, %c0_i32_11 : i32
    scf.if %31 {
      %c0_12 = arith.constant 0 : index
      %c0_13 = arith.constant 0 : index
      %32 = vector.load %arg7[%c0_12, %c0_13] : memref<8x128xf32, #tpu.memory_space<vmem>>, vector<8x128xf32>
      %33 = vector.shape_cast %32 : vector<8x128xf32> to vector<1x8x128xf32>
      %cst_14 = arith.constant dense<0.000000e+00> : vector<1xf32>
      %34 = vector.multi_reduction <add>, %33, %cst_14 [1, 2] : vector<1x8x128xf32> to vector<1xf32>
      %35 = vector.shape_cast %34 : vector<1xf32> to vector<1x1x1xf32>
      %36 = vector.extract %35[0, 0, 0] : f32 from vector<1x1x1xf32>
      %37 = vector.broadcast %36 : f32 to vector<1x1xf32>
      %c0_15 = arith.constant 0 : index
      %c0_16 = arith.constant 0 : index
      %38 = vector.load %arg3[%c0_15, %c0_16] : memref<1x44xf32, #tpu.memory_space<vmem>>, vector<1x44xf32>
      %c0_17 = arith.constant 0 : index
      %c0_18 = arith.constant 0 : index
      %39 = vector.load %arg2[%c0_17, %c0_18] : memref<1x44xf32, #tpu.memory_space<vmem>>, vector<1x44xf32>
      %40 = arith.subf %38, %39 : vector<1x44xf32>
      %41 = arith.mulf %40, %40 : vector<1x44xf32>
      %42 = vector.shape_cast %41 : vector<1x44xf32> to vector<1x1x44xf32>
      %cst_19 = arith.constant dense<0.000000e+00> : vector<1xf32>
      %43 = vector.multi_reduction <add>, %42, %cst_19 [1, 2] : vector<1x1x44xf32> to vector<1xf32>
      %44 = vector.shape_cast %43 : vector<1xf32> to vector<1x1x1xf32>
      %45 = vector.extract %44[0, 0, 0] : f32 from vector<1x1x1xf32>
      %46 = vector.broadcast %45 : f32 to vector<1x1xf32>
      %cst_20 = arith.constant 0.000000e+00 : f32
      %47 = vector.broadcast %cst_20 : f32 to vector<1x1xf32>
      %48 = arith.subf %47, %37 : vector<1x1xf32>
      %c0_i32_21 = arith.constant 0 : i32
      %49 = arith.cmpi eq, %arg0, %c0_i32_21 : i32
      %cst_22 = arith.constant 0.000000e+00 : f32
      %50 = vector.broadcast %cst_22 : f32 to vector<1x1xf32>
      %51 = arith.select %49, %46, %50 : vector<1x1xf32>
      %52 = arith.addf %48, %51 : vector<1x1xf32>
      %53 = vector.shape_cast %52 : vector<1x1xf32> to vector<1x1x1xf32>
      %c0_23 = arith.constant 0 : index
      %c0_24 = arith.constant 0 : index
      %c0_25 = arith.constant 0 : index
      %54 = vector.load %arg6[%c0_23, %c0_24, %c0_25] : memref<1x1x1xf32, #tpu.memory_space<vmem>>, vector<1x1x1xf32>
      tpu.vector_store %arg6[%c0_23, %c0_24, %c0_25], %53 {strides = array<i32>} : memref<1x1x1xf32, #tpu.memory_space<vmem>>, vector<1x1x1xf32>,
    } else {
    }
    return
  }
  func.func @transform_0(%arg0: i32, %arg1: i32) -> (i32, i32) {
    %c0_i32 = arith.constant 0 : i32
    %c0_i32_0 = arith.constant 0 : i32
    %c0_i32_1 = arith.constant 0 : i32
    return %c0_i32, %c0_i32_0 : i32, i32
  }
  func.func @transform_1(%arg0: i32, %arg1: i32) -> (i32, i32) {
    %c0_i32 = arith.constant 0 : i32
    %c0_i32_0 = arith.constant 0 : i32
    %c0_i32_1 = arith.constant 0 : i32
    return %c0_i32, %c0_i32_0 : i32, i32
  }
  func.func @transform_2(%arg0: i32, %arg1: i32) -> (i32, i32) {
    %c2_i32 = arith.constant 2 : i32
    %0 = arith.muli %arg0, %c2_i32 : i32
    %1 = arith.addi %0, %arg1 : i32
    %c2_i32_0 = arith.constant 2 : i32
    %2 = arith.minsi %1, %c2_i32_0 : i32
    %c0_i32 = arith.constant 0 : i32
    %c0_i32_1 = arith.constant 0 : i32
    return %2, %c0_i32 : i32, i32
  }
  func.func @transform_3(%arg0: i32, %arg1: i32) -> (i32, i32) {
    %c2_i32 = arith.constant 2 : i32
    %0 = arith.muli %arg0, %c2_i32 : i32
    %1 = arith.addi %0, %arg1 : i32
    %c2_i32_0 = arith.constant 2 : i32
    %2 = arith.minsi %1, %c2_i32_0 : i32
    %c0_i32 = arith.constant 0 : i32
    %c0_i32_1 = arith.constant 0 : i32
    return %2, %c0_i32 : i32, i32
  }
  func.func @transform_4(%arg0: i32, %arg1: i32) -> (i32, i32, i32) {
    %c0_i32 = arith.constant 0 : i32
    %c0_i32_0 = arith.constant 0 : i32
    %c0_i32_1 = arith.constant 0 : i32
    return %arg0, %c0_i32, %c0_i32_0 : i32, i32, i32
  }
}

</mosaic_0001>

<llo_original>
// kernel: tpu_custom_call.1
$region0: #{tpu_custom_call.1}
  #allocation0 [shape = 'u32[]', space=smem, size = 0x4, offset = 0x4, fixed_abs, tag = 'smem constant byte address 0x4 - core index']
  #allocation1 [shape = 'u32[144,128]{1,0:T(1,128)}', space=vmem, size = 0x12000, scoped, tag = 'internal scratch']
  #allocation2 [shape = 'f32[8,128]{1,0:T(8,128)}', space=vmem, size = 0x1000, scoped, tag = 'scratch operand']
  %s0 = inlined_call_operand.hbm [shape: f32[1,44], index: 0, kind: input, shape index: {}]
  %s1 = inlined_call_operand.vmem [shape: f32[1,44], index: 1, kind: input, shape index: {}]
  %s2 = inlined_call_operand.hbm [shape: f32[44,128], index: 2, kind: input, shape index: {}]
  %s3 = inlined_call_operand.hbm [shape: f32[44,128], index: 3, kind: input, shape index: {}]
  %s4 = inlined_call_operand.vmem [shape: f32[2,1,1], index: 4, kind: output, shape index: {}]
  %s5 = sld [smem:[#allocation0]]
  $region69: #{tpu_custom_call.1} parent=0
    _
  %s7 = ssub.s32 1, %s5
  %s8 = scalar_select 0, %s7, %s5
  $region1: #{tpu_custom_call.1} parent=0
    #allocation3 [shape = 'u8[512]{0}', space=vmem, size = 0x400, scoped, tag = 'input window, operand 0, single buffered']
    #allocation4 [shape = 's32[2]{0}', space=sflag, size = 0x8, scoped, tag = 'scoped memory for tpu_custom_call.1']
    #allocation5 [shape = 'u8[16384]{0}', space=vmem, size = 0x4000, scoped, tag = 'input window, operand 2']
    #allocation6 [shape = 's32[2]{0}', space=sflag, size = 0x8, scoped, tag = 'scoped memory for tpu_custom_call.1']
    #allocation7 [shape = 'u8[16384]{0}', space=vmem, size = 0x4000, scoped, tag = 'input window, operand 3']
    %9 = vsyncpa [#allocation4], 0
    %10 = vsyncpa [#allocation6], 0
    %s11 = scalar_lea.sflag [#allocation6], 1
    %12 = vsyncpa %s11, 0
    loop: start=0, step=1, limit=6
    $region2: #{tpu_custom_call.1} parent=1 // loop_pre_header
      _
    $region3: #{tpu_custom_call.1} parent=1 // loop_header
      %s14 = sphi 0, %s18
      %p15 = scmp.ge.s32.totalorder %s14, 6
      %s21 = sphi 0, %s33
      %s22 = sphi 0, %s29
      %s23 = sphi 0, %s21
      %s24 = sphi 0, %s22
      %s25 = sphi 0, %s23
      %s26 = sphi 0, %s24
      %s34 = sphi 0, %s34
      %s36 = sphi 0, %s34
      %s37 = sphi 0, %s36
      %s51 = sphi 0, %s37
      %s55 = sphi 0, %s55
      %s57 = sphi 0, %s55
      %s58 = sphi 0, %s57
      %s72 = sphi 0, %s58
      %s86 = sphi 0, %s88
      %s89 = sphi 0, %s86
      %s90 = sphi 0, %s89
      %s106 = sphi 0, %s90
      %s120 = sphi 0, %s122
      %s123 = sphi 0, %s120
      %s124 = sphi 0, %s123
      %s140 = sphi 0, %s124
      %s146 = sphi 0, %s148
      %s149 = sphi 0, %s146
      %s150 = sphi 0, %s149
      %s166 = sphi 0, %s150
    $region4: #{tpu_custom_call.1} parent=1 // loop_header_branch
      %17 = sbr.rel (%p15) target = $region8
    $region5: #{tpu_custom_call.1} parent=1 // loop_body
      %s19 = ssub.s32 %s14, 1
      %s20 = ssub.s32 %s14, 2
      %s27 = sadd.s32 1, %s22
      %p28 = scmp.ge.s32.totalorder %s27, 2
      %s29 = scalar_select %p28, 0, %s27
      %s30 = sadd.s32 1, %s21
      %s31 = scalar_select %p28, %s30, %s21
      %p32 = scmp.ge.s32.totalorder %s31, 2
      %s33 = scalar_select %p32, 0, %s31
      %s35 = sadd.s32 %s34, 1
      %p38 = scmp.eq.s32.totalorder %s14, 3
      %p39 = scmp.ne.s32.totalorder %s34, %s36
      %p40 = scmp.eq.s32.totalorder %s14, 0
      %p41 = por %p39, %p40
      %p42 = scmp.ne.s32.totalorder %s34, %s36
      %p43 = scmp.eq.s32.totalorder %s19, 3
      %p44 = por %p42, %p43
      %p45 = scmp.ne.s32.totalorder %s36, %s37
      %p46 = scmp.eq.s32.totalorder %s19, 0
      %p47 = por %p45, %p46
      %p48 = scmp.ne.s32.totalorder %s36, %s37
      %p49 = scmp.eq.s32.totalorder %s20, 3
      %p50 = por %p48, %p49
      %p52 = scmp.ne.s32.totalorder %s37, %s51
      %p53 = scmp.eq.s32.totalorder %s20, 0
      %p54 = por %p52, %p53
      %s56 = sadd.s32 %s55, 1
      %p59 = scmp.eq.s32.totalorder %s14, 3
      %p60 = scmp.ne.s32.totalorder %s55, %s57
      %p61 = scmp.eq.s32.totalorder %s14, 0
      %p62 = por %p60, %p61
      %p63 = scmp.ne.s32.totalorder %s55, %s57
      %p64 = scmp.eq.s32.totalorder %s19, 3
      %p65 = por %p63, %p64
      %p66 = scmp.ne.s32.totalorder %s57, %s58
      %p67 = scmp.eq.s32.totalorder %s19, 0
      %p68 = por %p66, %p67
      %p69 = scmp.ne.s32.totalorder %s57, %s58
      %p70 = scmp.eq.s32.totalorder %s20, 3
      %p71 = por %p69, %p70
      %p73 = scmp.ne.s32.totalorder %s58, %s72
      %p74 = scmp.eq.s32.totalorder %s20, 0
      %p75 = por %p73, %p74
      %s76 = smul.u32 %s21, 2
      %s77 = sadd.s32 %s76, %s22
      %p78 = scmp.lt.s32.totalorder %s77, 2
      %s79 = scalar_select %p78, %s77, 2
      %s80 = smul.u32 %s33, 2
      %s81 = sadd.s32 %s80, %s29
      %p82 = scmp.lt.s32.totalorder %s81, 2
      %s83 = scalar_select %p82, %s81, 2
      %s84 = ssub.s32 %s79, %s83
      %p85 = scmp.eq.s32.totalorder %s84, 0
      %s87 = sadd.s32 %s86, 1
      %s88 = scalar_select %p85, %s86, %s87
      %p91 = pneg %p85
      %p92 = scmp.eq.s32.totalorder %s14, 3
      %p93 = por %p91, %p92
      %p94 = scmp.ne.s32.totalorder %s86, %s89
      %p95 = scmp.eq.s32.totalorder %s14, 0
      %p96 = por %p94, %p95
      %p97 = scmp.ne.s32.totalorder %s86, %s89
      %p98 = scmp.eq.s32.totalorder %s19, 3
      %p99 = por %p97, %p98
      %p100 = scmp.ne.s32.totalorder %s89, %s90
      %p101 = scmp.eq.s32.totalorder %s19, 0
      %p102 = por %p100, %p101
      %p103 = scmp.ne.s32.totalorder %s89, %s90
      %p104 = scmp.eq.s32.totalorder %s20, 3
      %p105 = por %p103, %p104
      %p107 = scmp.ne.s32.totalorder %s90, %s106
      %p108 = scmp.eq.s32.totalorder %s20, 0
      %p109 = por %p107, %p108
      %s110 = smul.u32 %s21, 2
      %s111 = sadd.s32 %s110, %s22
      %p112 = scmp.lt.s32.totalorder %s111, 2
      %s113 = scalar_select %p112, %s111, 2
      %s114 = smul.u32 %s33, 2
      %s115 = sadd.s32 %s114, %s29
      %p116 = scmp.lt.s32.totalorder %s115, 2
      %s117 = scalar_select %p116, %s115, 2
      %s118 = ssub.s32 %s113, %s117
      %p119 = scmp.eq.s32.totalorder %s118, 0
      %s121 = sadd.s32 %s120, 1
      %s122 = scalar_select %p119, %s120, %s121
      %p125 = pneg %p119
      %p126 = scmp.eq.s32.totalorder %s14, 3
      %p127 = por %p125, %p126
      %p128 = scmp.ne.s32.totalorder %s120, %s123
      %p129 = scmp.eq.s32.totalorder %s14, 0
      %p130 = por %p128, %p129
      %p131 = scmp.ne.s32.totalorder %s120, %s123
      %p132 = scmp.eq.s32.totalorder %s19, 3
      %p133 = por %p131, %p132
      %p134 = scmp.ne.s32.totalorder %s123, %s124
      %p135 = scmp.eq.s32.totalorder %s19, 0
      %p136 = por %p134, %p135
      %p137 = scmp.ne.s32.totalorder %s123, %s124
      %p138 = scmp.eq.s32.totalorder %s20, 3
      %p139 = por %p137, %p138
      %p141 = scmp.ne.s32.totalorder %s124, %s140
      %p142 = scmp.eq.s32.totalorder %s20, 0
      %p143 = por %p141, %p142
      %s144 = ssub.s32 %s21, %s33
      %p145 = scmp.eq.s32.totalorder %s144, 0
      %s147 = sadd.s32 %s146, 1
      %s148 = scalar_select %p145, %s146, %s147
      %p151 = pneg %p145
      %p152 = scmp.eq.s32.totalorder %s14, 3
      %p153 = por %p151, %p152
      %p154 = scmp.ne.s32.totalorder %s146, %s149
      %p155 = scmp.eq.s32.totalorder %s14, 0
      %p156 = por %p154, %p155
      %p157 = scmp.ne.s32.totalorder %s146, %s149
      %p158 = scmp.eq.s32.totalorder %s19, 3
      %p159 = por %p157, %p158
      %p160 = scmp.ne.s32.totalorder %s149, %s150
      %p161 = scmp.eq.s32.totalorder %s19, 0
      %p162 = por %p160, %p161
      %p163 = scmp.ne.s32.totalorder %s149, %s150
      %p164 = scmp.eq.s32.totalorder %s20, 3
      %p165 = por %p163, %p164
      %p167 = scmp.ne.s32.totalorder %s150, %s166
      %p168 = scmp.eq.s32.totalorder %s20, 0
      %p169 = por %p167, %p168
      %p170 = scmp.le.s32.totalorder 1, %s14
      %p171 = scmp.lt.s32.totalorder %s14, 5
      %p172 = pnand %p170, %p171
      %p173 = pneg %p172
      // Predicated region
      $region9: #{tpu_custom_call.1} parent=5 // pred_check
        _
      $region10: #{tpu_custom_call.1} parent=5 // pred_check_branch
        %175 = sbr.rel (%p172) target = $region12
      $region11: #{tpu_custom_call.1} parent=5 // pred_region
        %s176 = ssub.s32 %s14, 1
        // Predicated region
        $region13: #{tpu_custom_call.1} parent=11 // pred_check
          %p177 = pneg %p47
        $region14: #{tpu_custom_call.1} parent=11 // pred_check_branch
          %179 = sbr.rel (%p177) target = $region16
        $region15: #{tpu_custom_call.1} parent=11 // pred_region
          %s181 = ssub.s32 16, 16
          %182 = vsyncadd [#allocation4], %s181
          %s184 = sshll.u32 [#allocation3], 4
          %s185 = int_to_ptr.vmem [resolvable:$true] %s184
          %187 = dma.hbm_to_vmem [thread:$0]  %s0, 16, %s185, [#allocation4]
        $region16: #{tpu_custom_call.1} parent=11 // pred_fallthru
          _
        // Predicated region
        $region17: #{tpu_custom_call.1} parent=11 // pred_check
          %p188 = pneg %p68
        $region18: #{tpu_custom_call.1} parent=11 // pred_check_branch
          %190 = sbr.rel (%p188) target = $region20
        $region19: #{tpu_custom_call.1} parent=11 // pred_region
          _
        $region20: #{tpu_custom_call.1} parent=11 // pred_fallthru
          _
      $region12: #{tpu_custom_call.1} parent=5 // pred_fallthru
        _
      %p191 = scmp.lt.s32.totalorder %s14, 4
      // Predicated region
      $region21: #{tpu_custom_call.1} parent=5 // pred_check
        %p192 = pneg %p191
      $region22: #{tpu_custom_call.1} parent=5 // pred_check_branch
        %194 = sbr.rel (%p192) target = $region24
      $region23: #{tpu_custom_call.1} parent=5 // pred_region
        // Predicated region
        $region25: #{tpu_custom_call.1} parent=23 // pred_check
          %p195 = pneg %p96
        $region26: #{tpu_custom_call.1} parent=23 // pred_check_branch
          %197 = sbr.rel (%p195) target = $region28
        $region27: #{tpu_custom_call.1} parent=23 // pred_region
          %s198 = sand.u32 %s14, 1
          %s199 = scalar_lea.sflag [#allocation6], %s198
          %s200 = sand.u32 %s86, 1
          %s201 = smul.addr %s200, 16
          %s202 = scalar_lea.vmem [#allocation5], %s201
          %s203 = smul.u32 %s21, 2
          %s204 = sadd.s32 %s203, %s22
          %p205 = scmp.lt.s32.totalorder %s204, 2
          %s206 = scalar_select %p205, %s204, 2
          %s207 = smul.u32 2, %s206
          %s209 = ssub.s32 256, 256
          %210 = vsyncadd %s199, %s209
          %s211 = smul.addr %s207, 128
          %s212 = scalar_lea.hbm %s2, %s211
          %s213 = sshll.u32 %s202, 4
          %s214 = int_to_ptr.vmem [resolvable:$true] %s213
          %219 = dma.hbm_to_vmem [thread:$0]  %s212, 256, %s214, %s199, 128, 128, 8
        $region28: #{tpu_custom_call.1} parent=23 // pred_fallthru
          _
        // Predicated region
        $region29: #{tpu_custom_call.1} parent=23 // pred_check
          %p220 = pneg %p130
        $region30: #{tpu_custom_call.1} parent=23 // pred_check_branch
          %222 = sbr.rel (%p220) target = $region32
        $region31: #{tpu_custom_call.1} parent=23 // pred_region
          %s223 = sand.u32 %s14, 1
          %s224 = scalar_lea.sflag [#allocation6], %s223
          %s225 = sand.u32 %s120, 1
          %s226 = smul.addr %s225, 16
          %s227 = scalar_lea.vmem [#allocation7], %s226
          %s228 = smul.u32 %s21, 2
          %s229 = sadd.s32 %s228, %s22
          %p230 = scmp.lt.s32.totalorder %s229, 2
          %s231 = scalar_select %p230, %s229, 2
          %s232 = smul.u32 2, %s231
          %s234 = ssub.s32 256, 256
          %235 = vsyncadd %s224, %s234
          %s236 = smul.addr %s232, 128
          %s237 = scalar_lea.hbm %s3, %s236
          %s238 = sshll.u32 %s227, 4
          %s239 = int_to_ptr.vmem [resolvable:$true] %s238
          %244 = dma.hbm_to_vmem [thread:$0]  %s237, 256, %s239, %s224, 128, 128, 8
        $region32: #{tpu_custom_call.1} parent=23 // pred_fallthru
          _
      $region24: #{tpu_custom_call.1} parent=5 // pred_fallthru
        _
      %p245 = scmp.le.s32.totalorder 1, %s14
      %p246 = scmp.lt.s32.totalorder %s14, 5
      %p247 = pnand %p245, %p246
      %p248 = pneg %p247
      // Predicated region
      $region33: #{tpu_custom_call.1} parent=5 // pred_check
        _
      $region34: #{tpu_custom_call.1} parent=5 // pred_check_branch
        %250 = sbr.rel (%p247) target = $region36
      $region35: #{tpu_custom_call.1} parent=5 // pred_region
        %s251 = ssub.s32 %s14, 1
        // Predicated region
        $region37: #{tpu_custom_call.1} parent=35 // pred_check
          %p252 = pneg %p47
        $region38: #{tpu_custom_call.1} parent=35 // pred_check_branch
          %254 = sbr.rel (%p252) target = $region40
        $region39: #{tpu_custom_call.1} parent=35 // pred_region
          %255 = dma.done [#allocation4], 16
        $region40: #{tpu_custom_call.1} parent=35 // pred_fallthru
          _
        %s256 = sand.u32 %s19, 1
        %s257 = scalar_lea.sflag [#allocation6], %s256
        %s258 = sand.u32 %s89, 1
        %s259 = smul.addr %s258, 16
        %s260 = scalar_lea.vmem [#allocation5], %s259
        // Predicated region
        $region41: #{tpu_custom_call.1} parent=35 // pred_check
          %p261 = pneg %p102
        $region42: #{tpu_custom_call.1} parent=35 // pred_check_branch
          %263 = sbr.rel (%p261) target = $region44
        $region43: #{tpu_custom_call.1} parent=35 // pred_region
          %264 = dma.done %s257, 256
        $region44: #{tpu_custom_call.1} parent=35 // pred_fallthru
          _
        %s265 = sand.u32 %s19, 1
        %s266 = scalar_lea.sflag [#allocation6], %s265
        %s267 = sand.u32 %s123, 1
        %s268 = smul.addr %s267, 16
        %s269 = scalar_lea.vmem [#allocation7], %s268
        // Predicated region
        $region45: #{tpu_custom_call.1} parent=35 // pred_check
          %p270 = pneg %p136
        $region46: #{tpu_custom_call.1} parent=35 // pred_check_branch
          %272 = sbr.rel (%p270) target = $region48
        $region47: #{tpu_custom_call.1} parent=35 // pred_region
          %273 = dma.done %s266, 256
        $region48: #{tpu_custom_call.1} parent=35 // pred_fallthru
          _
        %p274 = pneg %p47
        %p275 = pneg %p44
        %p276 = pneg %p68
        %p277 = pneg %p65
        %s278 = sand.u32 %s19, 1
        %s279 = scalar_lea.sflag [#allocation6], %s278
        %s280 = sand.u32 %s89, 1
        %s281 = smul.addr %s280, 16
        %s282 = scalar_lea.vmem [#allocation5], %s281
        %p283 = pneg %p102
        %p284 = pneg %p99
        %s285 = sand.u32 %s19, 1
        %s286 = scalar_lea.sflag [#allocation6], %s285
        %s287 = sand.u32 %s123, 1
        %s288 = smul.addr %s287, 16
        %s289 = scalar_lea.vmem [#allocation7], %s288
        %p290 = pneg %p136
        %p291 = pneg %p133
        %p292 = pneg %p162
        %p293 = pneg %p159
        %p294 = scmp.lt.s32.totalorder %s23, 1
        %s295 = scalar_select %p294, %s23, 1
        %s296 = scalar_lea.vmem %s4, %s295
        %s297 = smul.u32 %s23, 2
        %s298 = sadd.s32 %s297, %s24
        %p299 = scmp.lt.s32.totalorder %s298, 2
        %s300 = scalar_select %p299, %s298, 2
        %s301 = smul.u32 2, %s300
        %s302 = smul.u32 %s23, 2
        %s303 = sadd.s32 %s302, %s24
        %p304 = scmp.lt.s32.totalorder %s303, 2
        %s305 = scalar_select %p304, %s303, 2
        %s306 = smul.u32 2, %s305
        %p307 = scmp.lt.s32.totalorder %s23, 1
        %s308 = scalar_select %p307, %s23, 1
        %s309 = scalar_lea.vmem %s4, %s308
        %p310 = scmp.eq.s32.totalorder %s24, 0
        // Predicated region
        $region49: #{tpu_custom_call.1} parent=35 // pred_check
          %p311 = pneg %p310
        $region50: #{tpu_custom_call.1} parent=35 // pred_check_branch
          %313 = sbr.rel (%p311) target = $region52
        $region51: #{tpu_custom_call.1} parent=35 // pred_region
          %314 = vst [vmem:[#allocation2] sm:$0xff] 0.0
        $region52: #{tpu_custom_call.1} parent=35 // pred_fallthru
          _
        %s315 = smul.u32 %s23, 2
        %s316 = sadd.s32 %s315, %s24
        %s317 = smul.u32 %s316, 16
        %s318 = ssub.s32 44, %s317
        %v319 = vlaneseq
        %v320 = vshrl.u32 %v319, 7
        %v321 = vadd.s32 %v320, 8
        %v322 = vstv %s318
        %vm323 = vcmp.lt.s32.totalorder %v320, %v322
        %vm324 = vcmp.lt.s32.totalorder %v321, %v322
        %v325 = vld [vmem:[%s260] sm:$0xff]
        %v326 = vld [vmem:[%s260 + $0x8] sm:$0xff]
        %v327 = vsel %vm323, 1, 0
        %v328 = vsel %vm324, 1, 0
        %vm329 = vcmp.eq.s32.totalorder %v327, 1
        %vm330 = vcmp.eq.s32.totalorder %v328, 1
        %v331 = vsel %vm329, %v325, 1.0
        %v332 = vsel %vm330, %v326, 1.0
        %v333 = vld [vmem:[%s269] sm:$0xff]
        %v334 = vld [vmem:[%s269 + $0x8] sm:$0xff]
        %v335 = vsel %vm329, %v333, 0.0
        %v336 = vsel %vm330, %v334, 0.0
        %v337 = vadd.f32 %v331, 1e-08
        %v338 = vadd.f32 %v332, 1e-08
        %v339 = vlog2.pop %v337
        %v340 = vmul.f32 %v339, 0.6931472
        %v341 = vlog2.pop %v338
        %v342 = vmul.f32 %v341, 0.6931472
        %v343 = vmul.f32 %v335, %v340
        %v344 = vmul.f32 %v336, %v342
        %v345 = vld [vmem:[#allocation2] sm:$0xff]
        %v346 = vadd.f32 %v343, %v344
        %v347 = vadd.f32 %v345, %v346
        %348 = vst [vmem:[#allocation2] sm:$0xff] %v347
        %p349 = scmp.eq.s32.totalorder %s24, 1
        // Predicated region
        $region53: #{tpu_custom_call.1} parent=35 // pred_check
          %p350 = pneg %p349
        $region54: #{tpu_custom_call.1} parent=35 // pred_check_branch
          %352 = sbr.rel (%p350) target = $region56
        $region55: #{tpu_custom_call.1} parent=35 // pred_region
          %v353 = vld [vmem:[#allocation2] sm:$0xff]
          %354 = vadd.xlane.f32.xlu0 %v353
          %v355 = vpop.xlane.xlu0 %354
          %v356 = vrot.slane %v355, 4
          %v357 = vadd.f32 %v355, %v356
          %v358 = vrot.slane %v357, 2
          %v359 = vadd.f32 %v357, %v358
          %v360 = vrot.slane %v359, 1
          %v361 = vadd.f32 %v359, %v360
          %s362 = vtos %v361
          %v363 = vstv %s362
          %v364 = vld [vmem:[%s1] sm:$0x1]
          %v365 = vld [vmem:[#allocation3] sm:$0x1]
          %v366 = vsub.f32 %v364, %v365
          %v367 = vmul.f32 %v366, %v366
          %vm368 = vcmask 352256
          %v369 = vsel %vm368, %v367, 0.0
          %370 = vadd.xlane.f32.xlu0 %v369
          %v371 = vpop.xlane.xlu0 %370
          %v372 = vrot.slane %v371, 4
          %v373 = vadd.f32 %v371, %v372
          %v374 = vrot.slane %v373, 2
          %v375 = vadd.f32 %v373, %v374
          %v376 = vrot.slane %v375, 1
          %v377 = vadd.f32 %v375, %v376
          %s378 = vtos %v377
          %v379 = vstv %s378
          %v380 = vsub.f32 0.0, %v363
          %p381 = scmp.eq.s32.totalorder %s23, 0
          %s382 = scalar_select %p381, 1, 0
          %v383 = vstv %s382
          %vm384 = vcmp.eq.s32.totalorder %v383, 1
          %v385 = vsel %vm384, %v379, 0.0
          %v386 = vadd.f32 %v380, %v385
          %vm387 = vcmask 0
          %388 = vst.msk [vmem:[%s309] sm:$0x1] %vm387, %v386
        $region56: #{tpu_custom_call.1} parent=35 // pred_fallthru
          _
        %p389 = scmp.lt.s32.totalorder %s23, 1
        %s390 = scalar_select %p389, %s23, 1
        %s391 = scalar_lea.vmem %s4, %s390
        // Predicated region
        $region57: #{tpu_custom_call.1} parent=35 // pred_check
          %p392 = pneg %p159
        $region58: #{tpu_custom_call.1} parent=35 // pred_check_branch
          %394 = sbr.rel (%p392) target = $region60
        $region59: #{tpu_custom_call.1} parent=35 // pred_region
          _
        $region60: #{tpu_custom_call.1} parent=35 // pred_fallthru
          _
      $region36: #{tpu_custom_call.1} parent=5 // pred_fallthru
        _
      %p395 = scmp.le.s32.totalorder 2, %s14
      // Predicated region
      $region61: #{tpu_custom_call.1} parent=5 // pred_check
        %p396 = pneg %p395
      $region62: #{tpu_custom_call.1} parent=5 // pred_check_branch
        %398 = sbr.rel (%p396) target = $region64
      $region63: #{tpu_custom_call.1} parent=5 // pred_region
        %s399 = ssub.s32 %s14, 2
        // Predicated region
        $region65: #{tpu_custom_call.1} parent=63 // pred_check
          %p400 = pneg %p165
        $region66: #{tpu_custom_call.1} parent=63 // pred_check_branch
          %402 = sbr.rel (%p400) target = $region68
        $region67: #{tpu_custom_call.1} parent=63 // pred_region
          %p403 = scmp.lt.s32.totalorder %s25, 1
          %s404 = scalar_select %p403, %s25, 1
          %s405 = scalar_lea.vmem %s4, %s404
        $region68: #{tpu_custom_call.1} parent=63 // pred_fallthru
          _
      $region64: #{tpu_custom_call.1} parent=5 // pred_fallthru
        _
    $region6: #{tpu_custom_call.1} parent=1 // loop_footer
      %s18 = sadd.s32 1, %s14
    $region7: #{tpu_custom_call.1} parent=1 // loop_footer_branch
      %13 = sbr.rel target = $region3
    $region8: #{tpu_custom_call.1} parent=1 // loop_exit
      _
    %406 = vsyncpa [#allocation4], 1
    %s407 = scalar_lea.sflag [#allocation4], 1
    %408 = vsyncpa %s407, 1
    %409 = vsyncpa [#allocation6], 1
    %s410 = scalar_lea.sflag [#allocation6], 1
    %411 = vsyncpa %s410, 1

</llo_original>
